<compile_context>
chip_gen: v5e
topology: v5e:2x2
jax: 0.10.0
libtpu: 0.0.40
codegen_flags: <defaults>
</compile_context>

<pallas_src>
import math

import jax
import jax.numpy as jnp
from jax import lax
from jax.experimental import pallas as pl
from jax.experimental.pallas import tpu as pltpu


# ----------------------------------------------------------------------------
# Host-side helpers (pure indexing / constants, equivalent to the torch code)
# ----------------------------------------------------------------------------
def conv_graph_st(x, time_window_size, stride):
    """Equivalent of Conv_GraphST followed by transpose(2, 3).

    x: (bs, time_length, num_sensors, feature_dim)
    returns: (bs, num_windows, time_window_size, num_sensors, feature_dim), L
             with [b, l, w, s, c] = x[b, l*stride + w, s, c]
    """
    bs, T, S, D = x.shape
    L = (T - time_window_size) // stride + 1
    idx = jnp.arange(L)[:, None] * stride + jnp.arange(time_window_size)[None, :]
    return x[:, idx, :, :], L


def mask_matrix(num_node, time_length, decay_rate):
    """Equivalent of Mask_Matrix: block (i, j) of size num_node^2 = decay^|i-j|."""
    t = jnp.arange(time_length)
    blk = jnp.asarray(decay_rate, jnp.float32) ** jnp.abs(
        t[:, None] - t[None, :]).astype(jnp.float32)
    return jnp.kron(blk, jnp.ones((num_node, num_node), jnp.float32))


# ----------------------------------------------------------------------------
# Pallas kernel: full per-graph forward
# ----------------------------------------------------------------------------
def _make_kernel(num_sensors, time_window_size, pool_choice):
    S = num_sensors
    W = time_window_size
    inv_w = 1.0 / W

    def kernel(x_ref, wmap_ref, bmap_ref, wth_ref, bth_ref, mask_ref, o_ref):
        x = x_ref[0]              # (N, D)   node features of this graph
        wmap = wmap_ref[...]      # (D, D)   graph-construction mapping (in, out)
        bmap = bmap_ref[...]      # (1, D)
        wth = wth_ref[...]        # (D, Dout) MPNN theta (in, out)
        bth = bth_ref[...]        # (1, Dout)
        mask = mask_ref[...]      # (N, N)   pre_relation decay mask

        n = x.shape[0]

        # ---- Dot_Graph_Construction_weights ---------------------------------
        m = jnp.dot(x, wmap, preferred_element_type=jnp.float32) + bmap
        # M @ M^T without materializing a transpose (NT matmul on the MXU).
        scores = lax.dot_general(
            m, m, (((1,), (1,)), ((), ())),
            preferred_element_type=jnp.float32)            # (N, N)

        row = lax.broadcasted_iota(jnp.int32, (n, n), 0)
        col = lax.broadcasted_iota(jnp.int32, (n, n), 1)
        eye = (row == col).astype(jnp.float32)

        scores = scores - eye * 1e8
        scores = jax.nn.leaky_relu(scores, negative_slope=0.01)

        smax = jnp.max(scores, axis=-1, keepdims=True)
        p = jnp.exp(scores - smax)
        denom = jnp.sum(p, axis=-1, keepdims=True)
        adj = p / denom
        adj = (adj + eye) * mask                            # (+I) * pre_relation

        # ---- MPNN_mk_v2 (k=1) + residual + leaky ReLU ------------------------
        h = jnp.dot(adj, x, preferred_element_type=jnp.float32)      # (N, D)
        out = jnp.dot(h, wth, preferred_element_type=jnp.float32) + bth
        out = jax.nn.leaky_relu(out + x, negative_slope=0.01)        # (N, Dout)

        # ---- pool over the time-window axis (node index = w*S + s) ----------
        acc = out[0:S, :]
        for w in range(1, W):                     # W is small & static: unrolled
            seg = out[w * S:(w + 1) * S, :]
            if pool_choice == "mean":
                acc = acc + seg
            else:                                 # "max"
                acc = jnp.maximum(acc, seg)
        pooled = acc * inv_w if pool_choice == "mean" else acc

        o_ref[0] = pooled.astype(o_ref.dtype)

    return kernel


def graph_convpool_mpnn_block_v6(x, W_map, b_map, W_theta, b_theta, *,
                                 time_window_size, stride, decay, pool_choice):
    """x: (bs, time_length, num_sensors, input_dim). Weights are (in, out)
    (i.e. torch Linear weight transposed). Returns (bs, num_windows,
    num_sensors, output_dim)."""
    bs, T, S, D = x.shape
    xw, L = conv_graph_st(x, time_window_size, stride)      # (bs, L, W, S, D)
    N = time_window_size * S
    BN = bs * L
    nodes = xw.reshape(BN, N, D)

    Dout = W_theta.shape[1]
    mask = mask_matrix(S, time_window_size, decay)          # (N, N)
    bmap = b_map.reshape(1, D)
    bth = b_theta.reshape(1, Dout)

    kernel = _make_kernel(S, time_window_size, pool_choice)

    pooled = pl.pallas_call(
        kernel,
        out_shape=jax.ShapeDtypeStruct((BN, S, Dout), jnp.float32),
        grid_spec=pltpu.PrefetchScalarGridSpec(
            num_scalar_prefetch=0,
            grid=(BN,),                                     # one step per graph
            in_specs=[
                pl.BlockSpec((1, N, D), lambda g: (g, 0, 0)),   # node features
                pl.BlockSpec((D, D), lambda g: (0, 0)),         # W_map (resident)
                pl.BlockSpec((1, D), lambda g: (0, 0)),         # b_map
                pl.BlockSpec((D, Dout), lambda g: (0, 0)),      # W_theta
                pl.BlockSpec((1, Dout), lambda g: (0, 0)),      # b_theta
                pl.BlockSpec((N, N), lambda g: (0, 0)),         # decay mask
            ],
            out_specs=pl.BlockSpec((1, S, Dout), lambda g: (g, 0, 0)),
        ),
        compiler_params=pltpu.CompilerParams(
            dimension_semantics=("parallel",)),
    )(nodes, W_map, bmap, W_theta, bth, mask)

    return pooled.reshape(bs, L, S, Dout)


# ----------------------------------------------------------------------------
# Pure-JAX reference (mirrors the PyTorch forward exactly)
# ----------------------------------------------------------------------------
def reference(x, W_map, b_map, W_theta, b_theta, *, time_window_size, stride,
              decay, pool_choice):
    bs, T, S, D = x.shape
    xw, L = conv_graph_st(x, time_window_size, stride)
    N = time_window_size * S
    nodes = xw.reshape(bs * L, N, D)

    m = nodes @ W_map + b_map[None, None, :]
    adj = jnp.einsum('gnd,gmd->gnm', m, m)
    eye = jnp.eye(N, dtype=jnp.float32)
    adj = jax.nn.leaky_relu(adj - eye * 1e8, negative_slope=0.01)
    adj = jax.nn.softmax(adj, axis=-1)
    adj = (adj + eye) * mask_matrix(S, time_window_size, decay)

    h = jnp.einsum('gnm,gmd->gnd', adj, nodes)
    out = h @ W_theta + b_theta[None, None, :]
    out = jax.nn.leaky_relu(out + nodes, negative_slope=0.01)

    out = out.reshape(bs, L, time_window_size, S, -1)
    if pool_choice == "mean":
        return out.mean(axis=2)
    return out.max(axis=2)


if __name__ == "__main__":
    bs, T, S, D = 2, 16, 8, 32          # batch, time_length, num_sensors, input_dim
    tws, stride, decay = 4, 2, 0.7
    Dout = D                            # residual in MPNN_mk_v2 requires out == in
    pool_choice = "mean"

    key = jax.random.PRNGKey(0)
    k1, k2, k3, k4, k5 = jax.random.split(key, 5)
    x = jax.random.normal(k1, (bs, T, S, D), dtype=jnp.float32)
    # Linear parameters stored as (in, out) == torch weight.T
    W_map = jax.random.normal(k2, (D, D), dtype=jnp.float32) / math.sqrt(D)
    b_map = jax.random.normal(k3, (D,), dtype=jnp.float32) * 0.01
    W_theta = jax.random.normal(k4, (D, Dout), dtype=jnp.float32) / math.sqrt(D)
    b_theta = jax.random.normal(k5, (Dout,), dtype=jnp.float32) * 0.01

    out = graph_convpool_mpnn_block_v6(
        x, W_map, b_map, W_theta, b_theta,
        time_window_size=tws, stride=stride, decay=decay,
        pool_choice=pool_choice)
    out = jax.block_until_ready(out)

    ref = reference(x, W_map, b_map, W_theta, b_theta,
                    time_window_size=tws, stride=stride, decay=decay,
                    pool_choice=pool_choice)

    L = (T - tws) // stride + 1
    assert out.shape == (bs, L, S, Dout), out.shape
    assert jnp.allclose(out, ref, atol=1e-4, rtol=1e-4), \
        f"max abs err {float(jnp.max(jnp.abs(out - ref)))}"

    print("KERNEL_OK")
</pallas_src>

<mosaic_0001>
module attributes {stable_mosaic.version = 11 : i64} {
  func.func @kernel(%arg0: i32, %arg1: memref<1x32x32xf32, #tpu.memory_space<vmem>>, %arg2: memref<32x32xf32, #tpu.memory_space<vmem>>, %arg3: memref<1x32xf32, #tpu.memory_space<vmem>>, %arg4: memref<32x32xf32, #tpu.memory_space<vmem>>, %arg5: memref<1x32xf32, #tpu.memory_space<vmem>>, %arg6: memref<32x32xf32, #tpu.memory_space<vmem>>, %arg7: memref<1x8x32xf32, #tpu.memory_space<vmem>>) attributes {dimension_semantics = [#tpu.dimension_semantics<parallel>], iteration_bounds = array<i64: 14>, scalar_prefetch = 0 : i64, scratch_operands = 0 : i64, tpu.core_type = #tpu.core_type<tc>, window_params = [{transform_indices = @transform_0, window_bounds = array<i64: 1, 32, 32>}, {pipeline_mode = #tpu.pipeline_mode<synchronous>, transform_indices = @transform_1, window_bounds = array<i64: 32, 32>}, {pipeline_mode = #tpu.pipeline_mode<synchronous>, transform_indices = @transform_2, window_bounds = array<i64: 1, 32>}, {pipeline_mode = #tpu.pipeline_mode<synchronous>, transform_indices = @transform_3, window_bounds = array<i64: 32, 32>}, {pipeline_mode = #tpu.pipeline_mode<synchronous>, transform_indices = @transform_4, window_bounds = array<i64: 1, 32>}, {pipeline_mode = #tpu.pipeline_mode<synchronous>, transform_indices = @transform_5, window_bounds = array<i64: 32, 32>}, {transform_indices = @transform_6, window_bounds = array<i64: 1, 8, 32>}]} {
    %c0 = arith.constant 0 : index
    %c0_0 = arith.constant 0 : index
    %c0_1 = arith.constant 0 : index
    %0 = vector.load %arg1[%c0, %c0_0, %c0_1] : memref<1x32x32xf32, #tpu.memory_space<vmem>>, vector<1x32x32xf32>
    %1 = vector.shape_cast %0 : vector<1x32x32xf32> to vector<32x32xf32>
    %c0_2 = arith.constant 0 : index
    %c0_3 = arith.constant 0 : index
    %2 = vector.load %arg2[%c0_2, %c0_3] : memref<32x32xf32, #tpu.memory_space<vmem>>, vector<32x32xf32>
    %c0_4 = arith.constant 0 : index
    %c0_5 = arith.constant 0 : index
    %3 = vector.load %arg3[%c0_4, %c0_5] : memref<1x32xf32, #tpu.memory_space<vmem>>, vector<1x32xf32>
    %c0_6 = arith.constant 0 : index
    %c0_7 = arith.constant 0 : index
    %4 = vector.load %arg4[%c0_6, %c0_7] : memref<32x32xf32, #tpu.memory_space<vmem>>, vector<32x32xf32>
    %c0_8 = arith.constant 0 : index
    %c0_9 = arith.constant 0 : index
    %5 = vector.load %arg5[%c0_8, %c0_9] : memref<1x32xf32, #tpu.memory_space<vmem>>, vector<1x32xf32>
    %c0_10 = arith.constant 0 : index
    %c0_11 = arith.constant 0 : index
    %6 = vector.load %arg6[%c0_10, %c0_11] : memref<32x32xf32, #tpu.memory_space<vmem>>, vector<32x32xf32>
    %cst = arith.constant dense<0.000000e+00> : vector<32x32xf32>
    %7 = tpu.matmul %1, %2, %cst {dimension_numbers = #tpu.dot_dimension_numbers<[1], [0], [0], [1], [0, 0, 1, 1], [], []>} : vector<32x32xf32>, vector<32x32xf32>, vector<32x32xf32> -> vector<32x32xf32>
    %8 = vector.broadcast %3 : vector<1x32xf32> to vector<32x32xf32>
    %9 = arith.addf %7, %8 : vector<32x32xf32>
    %cst_12 = arith.constant dense<0.000000e+00> : vector<32x32xf32>
    %10 = tpu.matmul %9, %9, %cst_12 {dimension_numbers = #tpu.dot_dimension_numbers<[1], [1], [0], [0], [0, 0, 1, 0], [], []>} : vector<32x32xf32>, vector<32x32xf32>, vector<32x32xf32> -> vector<32x32xf32>
    %11 = tpu.iota {dimensions = array<i32: 0>} : vector<32x32xi32>
    %12 = tpu.iota {dimensions = array<i32: 1>} : vector<32x32xi32>
    %13 = arith.cmpi eq, %11, %12 : vector<32x32xi32>
    %14 = arith.extui %13 : vector<32x32xi1> to vector<32x32xi32>
    %15 = arith.sitofp %14 : vector<32x32xi32> to vector<32x32xf32>
    %cst_13 = arith.constant 1.000000e+08 : f32
    %16 = vector.broadcast %cst_13 : f32 to vector<32x32xf32>
    %17 = arith.mulf %15, %16 : vector<32x32xf32>
    %18 = arith.subf %10, %17 : vector<32x32xf32>
    %cst_14 = arith.constant 0.00999999977 : f32
    %cst_15 = arith.constant 0.000000e+00 : f32
    %19 = vector.broadcast %cst_15 : f32 to vector<32x32xf32>
    %20 = arith.cmpf oge, %18, %19 : vector<32x32xf32>
    %21 = vector.broadcast %cst_14 : f32 to vector<32x32xf32>
    %22 = arith.mulf %21, %18 : vector<32x32xf32>
    %23 = arith.select %20, %18, %22 : vector<32x32xi1>, vector<32x32xf32>
    %cst_16 = arith.constant dense<0xFF800000> : vector<32xf32>
    %24 = vector.multi_reduction <maximumf>, %23, %cst_16 [1] : vector<32x32xf32> to vector<32xf32>
    %25 = vector.shape_cast %24 : vector<32xf32> to vector<32x1xf32>
    %26 = vector.broadcast %25 : vector<32x1xf32> to vector<32x32xf32>
    %27 = arith.subf %23, %26 : vector<32x32xf32>
    %28 = math.exp %27 : vector<32x32xf32>
    %cst_17 = arith.constant dense<0.000000e+00> : vector<32xf32>
    %29 = vector.multi_reduction <add>, %28, %cst_17 [1] : vector<32x32xf32> to vector<32xf32>
    %30 = vector.shape_cast %29 : vector<32xf32> to vector<32x1xf32>
    %31 = vector.broadcast %30 : vector<32x1xf32> to vector<32x32xf32>
    %32 = arith.divf %28, %31 : vector<32x32xf32>
    %33 = arith.addf %32, %15 : vector<32x32xf32>
    %34 = arith.mulf %33, %6 : vector<32x32xf32>
    %cst_18 = arith.constant dense<0.000000e+00> : vector<32x32xf32>
    %35 = tpu.matmul %34, %1, %cst_18 {dimension_numbers = #tpu.dot_dimension_numbers<[1], [0], [0], [1], [0, 0, 1, 1], [], []>} : vector<32x32xf32>, vector<32x32xf32>, vector<32x32xf32> -> vector<32x32xf32>
    %cst_19 = arith.constant dense<0.000000e+00> : vector<32x32xf32>
    %36 = tpu.matmul %35, %4, %cst_19 {dimension_numbers = #tpu.dot_dimension_numbers<[1], [0], [0], [1], [0, 0, 1, 1], [], []>} : vector<32x32xf32>, vector<32x32xf32>, vector<32x32xf32> -> vector<32x32xf32>
    %37 = vector.broadcast %5 : vector<1x32xf32> to vector<32x32xf32>
    %38 = arith.addf %36, %37 : vector<32x32xf32>
    %39 = arith.addf %38, %1 : vector<32x32xf32>
    %cst_20 = arith.constant 0.00999999977 : f32
    %cst_21 = arith.constant 0.000000e+00 : f32
    %40 = vector.broadcast %cst_21 : f32 to vector<32x32xf32>
    %41 = arith.cmpf oge, %39, %40 : vector<32x32xf32>
    %42 = vector.broadcast %cst_20 : f32 to vector<32x32xf32>
    %43 = arith.mulf %42, %39 : vector<32x32xf32>
    %44 = arith.select %41, %39, %43 : vector<32x32xi1>, vector<32x32xf32>
    %45 = vector.extract_strided_slice %44 {offsets = [0, 0], sizes = [8, 32], strides = [1, 1]} : vector<32x32xf32> to vector<8x32xf32>
    %46 = vector.extract_strided_slice %44 {offsets = [8, 0], sizes = [8, 32], strides = [1, 1]} : vector<32x32xf32> to vector<8x32xf32>
    %47 = arith.addf %45, %46 : vector<8x32xf32>
    %48 = vector.extract_strided_slice %44 {offsets = [16, 0], sizes = [8, 32], strides = [1, 1]} : vector<32x32xf32> to vector<8x32xf32>
    %49 = arith.addf %47, %48 : vector<8x32xf32>
    %50 = vector.extract_strided_slice %44 {offsets = [24, 0], sizes = [8, 32], strides = [1, 1]} : vector<32x32xf32> to vector<8x32xf32>
    %51 = arith.addf %49, %50 : vector<8x32xf32>
    %cst_22 = arith.constant 2.500000e-01 : f32
    %52 = vector.broadcast %cst_22 : f32 to vector<8x32xf32>
    %53 = arith.mulf %51, %52 : vector<8x32xf32>
    %c0_23 = arith.constant 0 : index
    %c0_24 = arith.constant 0 : index
    %c0_25 = arith.constant 0 : index
    %54 = vector.load %arg7[%c0_23, %c0_24, %c0_25] : memref<1x8x32xf32, #tpu.memory_space<vmem>>, vector<1x8x32xf32>
    %55 = vector.shape_cast %54 : vector<1x8x32xf32> to vector<8x32xf32>
    %56 = vector.shape_cast %53 : vector<8x32xf32> to vector<1x8x32xf32>
    tpu.vector_store %arg7[%c0_23, %c0_24, %c0_25], %56 {strides = array<i32>} : memref<1x8x32xf32, #tpu.memory_space<vmem>>, vector<1x8x32xf32>,
    return
  }
  func.func @transform_0(%arg0: i32) -> (i32, i32, i32) {
    %c0_i32 = arith.constant 0 : i32
    %c0_i32_0 = arith.constant 0 : i32
    %c0_i32_1 = arith.constant 0 : i32
    return %arg0, %c0_i32, %c0_i32_0 : i32, i32, i32
  }
  func.func @transform_1(%arg0: i32) -> (i32, i32) {
    %c0_i32 = arith.constant 0 : i32
    %c0_i32_0 = arith.constant 0 : i32
    %c0_i32_1 = arith.constant 0 : i32
    return %c0_i32, %c0_i32_0 : i32, i32
  }
  func.func @transform_2(%arg0: i32) -> (i32, i32) {
    %c0_i32 = arith.constant 0 : i32
    %c0_i32_0 = arith.constant 0 : i32
    %c0_i32_1 = arith.constant 0 : i32
    return %c0_i32, %c0_i32_0 : i32, i32
  }
  func.func @transform_3(%arg0: i32) -> (i32, i32) {
    %c0_i32 = arith.constant 0 : i32
    %c0_i32_0 = arith.constant 0 : i32
    %c0_i32_1 = arith.constant 0 : i32
    return %c0_i32, %c0_i32_0 : i32, i32
  }
  func.func @transform_4(%arg0: i32) -> (i32, i32) {
    %c0_i32 = arith.constant 0 : i32
    %c0_i32_0 = arith.constant 0 : i32
    %c0_i32_1 = arith.constant 0 : i32
    return %c0_i32, %c0_i32_0 : i32, i32
  }
  func.func @transform_5(%arg0: i32) -> (i32, i32) {
    %c0_i32 = arith.constant 0 : i32
    %c0_i32_0 = arith.constant 0 : i32
    %c0_i32_1 = arith.constant 0 : i32
    return %c0_i32, %c0_i32_0 : i32, i32
  }
  func.func @transform_6(%arg0: i32) -> (i32, i32, i32) {
    %c0_i32 = arith.constant 0 : i32
    %c0_i32_0 = arith.constant 0 : i32
    %c0_i32_1 = arith.constant 0 : i32
    return %arg0, %c0_i32, %c0_i32_0 : i32, i32, i32
  }
}

</mosaic_0001>

<llo_original>
// kernel: tpu_custom_call.1
$region0: #{tpu_custom_call.1}
  #allocation0 [shape = 'u32[]', space=smem, size = 0x4, offset = 0x4, fixed_abs, tag = 'smem constant byte address 0x4 - core index']
  #allocation1 [shape = 'u32[72,128]{1,0:T(1,128)}', space=vmem, size = 0x9000, scoped, tag = 'internal scratch']
  %s0 = inlined_call_operand.hbm [shape: f32[14,32,32], index: 0, kind: input, shape index: {}]
  %s1 = inlined_call_operand.hbm [shape: f32[32,32], index: 1, kind: input, shape index: {}]
  %s2 = inlined_call_operand.vmem [shape: f32[1,32], index: 2, kind: input, shape index: {}]
  %s3 = inlined_call_operand.hbm [shape: f32[32,32], index: 3, kind: input, shape index: {}]
  %s4 = inlined_call_operand.vmem [shape: f32[1,32], index: 4, kind: input, shape index: {}]
  %s5 = inlined_call_operand.hbm [shape: f32[32,32], index: 5, kind: input, shape index: {}]
  %s6 = inlined_call_operand.hbm [shape: f32[14,8,32], index: 6, kind: output, shape index: {}]
  %s7 = sld [smem:[#allocation0]]
  $region73: #{tpu_custom_call.1} parent=0
    _
  %s9 = ssub.s32 1, %s7
  %s10 = scalar_select 0, %s9, %s7
  $region1: #{tpu_custom_call.1} parent=0
    #allocation2 [shape = 'u8[32768]{0}', space=vmem, size = 0x8000, scoped, tag = 'input window, operand 0']
    #allocation3 [shape = 's32[2]{0}', space=sflag, size = 0x8, scoped, tag = 'scoped memory for tpu_custom_call.1']
    #allocation4 [shape = 's32[2]{0}', space=sflag, size = 0x8, scoped, tag = 'scoped memory for tpu_custom_call.1']
    #allocation5 [shape = 'u8[16384]{0}', space=vmem, size = 0x4000, scoped, tag = 'input window, operand 1, single buffered']
    #allocation6 [shape = 's32[1]{0}', space=sflag, size = 0x4, scoped, tag = 'scoped memory for tpu_custom_call.1']
    #allocation7 [shape = 'u8[16384]{0}', space=vmem, size = 0x4000, scoped, tag = 'input window, operand 3, single buffered']
    #allocation8 [shape = 'u8[16384]{0}', space=vmem, size = 0x4000, scoped, tag = 'input window, operand 5, single buffered']
    #allocation9 [shape = 's32[1]{0}', space=sflag, size = 0x4, scoped, tag = 'scoped memory for tpu_custom_call.1']
    #allocation10 [shape = 'u8[8192]{0}', space=vmem, size = 0x2000, scoped, tag = 'output window, operand 0']
    %11 = vsyncpa [#allocation3], 0
    %s12 = scalar_lea.sflag [#allocation3], 1
    %13 = vsyncpa %s12, 0
    %14 = vsyncpa [#allocation6], 0
    %15 = vsyncpa [#allocation9], 0
    %16 = vsyncpa [#allocation4], 0
    %s17 = scalar_lea.sflag [#allocation4], 1
    %18 = vsyncpa %s17, 0
    loop: start=0, step=1, limit=16
    $region2: #{tpu_custom_call.1} parent=1 // loop_pre_header
      _
    $region3: #{tpu_custom_call.1} parent=1 // loop_header
      %s20 = sphi 0, %s24
      %p21 = scmp.ge.s32.totalorder %s20, 16
      %s30 = sphi 0, %s32
      %s33 = sphi 0, %s30
      %s34 = sphi 0, %s33
      %s50 = sphi 0, %s34
      %s54 = sphi 0, %s54
      %s56 = sphi 0, %s54
      %s57 = sphi 0, %s56
      %s71 = sphi 0, %s57
      %s75 = sphi 0, %s75
      %s77 = sphi 0, %s75
      %s78 = sphi 0, %s77
      %s92 = sphi 0, %s78
      %s96 = sphi 0, %s96
      %s98 = sphi 0, %s96
      %s99 = sphi 0, %s98
      %s113 = sphi 0, %s99
      %s117 = sphi 0, %s117
      %s119 = sphi 0, %s117
      %s120 = sphi 0, %s119
      %s134 = sphi 0, %s120
      %s138 = sphi 0, %s138
      %s140 = sphi 0, %s138
      %s141 = sphi 0, %s140
      %s155 = sphi 0, %s141
      %s161 = sphi 0, %s163
      %s164 = sphi 0, %s161
      %s165 = sphi 0, %s164
      %s181 = sphi 0, %s165
    $region4: #{tpu_custom_call.1} parent=1 // loop_header_branch
      %23 = sbr.rel (%p21) target = $region8
    $region5: #{tpu_custom_call.1} parent=1 // loop_body
      %s25 = ssub.s32 %s20, 1
      %s26 = ssub.s32 %s20, 2
      %s27 = sadd.s32 %s20, 1
      %s28 = ssub.s32 %s20, %s27
      %p29 = scmp.eq.s32.totalorder %s28, 0
      %s31 = sadd.s32 %s30, 1
      %s32 = scalar_select %p29, %s30, %s31
      %p35 = pneg %p29
      %p36 = scmp.eq.s32.totalorder %s20, 13
      %p37 = por %p35, %p36
      %p38 = scmp.ne.s32.totalorder %s30, %s33
      %p39 = scmp.eq.s32.totalorder %s20, 0
      %p40 = por %p38, %p39
      %p41 = scmp.ne.s32.totalorder %s30, %s33
      %p42 = scmp.eq.s32.totalorder %s25, 13
      %p43 = por %p41, %p42
      %p44 = scmp.ne.s32.totalorder %s33, %s34
      %p45 = scmp.eq.s32.totalorder %s25, 0
      %p46 = por %p44, %p45
      %p47 = scmp.ne.s32.totalorder %s33, %s34
      %p48 = scmp.eq.s32.totalorder %s26, 13
      %p49 = por %p47, %p48
      %p51 = scmp.ne.s32.totalorder %s34, %s50
      %p52 = scmp.eq.s32.totalorder %s26, 0
      %p53 = por %p51, %p52
      %s55 = sadd.s32 %s54, 1
      %p58 = scmp.eq.s32.totalorder %s20, 13
      %p59 = scmp.ne.s32.totalorder %s54, %s56
      %p60 = scmp.eq.s32.totalorder %s20, 0
      %p61 = por %p59, %p60
      %p62 = scmp.ne.s32.totalorder %s54, %s56
      %p63 = scmp.eq.s32.totalorder %s25, 13
      %p64 = por %p62, %p63
      %p65 = scmp.ne.s32.totalorder %s56, %s57
      %p66 = scmp.eq.s32.totalorder %s25, 0
      %p67 = por %p65, %p66
      %p68 = scmp.ne.s32.totalorder %s56, %s57
      %p69 = scmp.eq.s32.totalorder %s26, 13
      %p70 = por %p68, %p69
      %p72 = scmp.ne.s32.totalorder %s57, %s71
      %p73 = scmp.eq.s32.totalorder %s26, 0
      %p74 = por %p72, %p73
      %s76 = sadd.s32 %s75, 1
      %p79 = scmp.eq.s32.totalorder %s20, 13
      %p80 = scmp.ne.s32.totalorder %s75, %s77
      %p81 = scmp.eq.s32.totalorder %s20, 0
      %p82 = por %p80, %p81
      %p83 = scmp.ne.s32.totalorder %s75, %s77
      %p84 = scmp.eq.s32.totalorder %s25, 13
      %p85 = por %p83, %p84
      %p86 = scmp.ne.s32.totalorder %s77, %s78
      %p87 = scmp.eq.s32.totalorder %s25, 0
      %p88 = por %p86, %p87
      %p89 = scmp.ne.s32.totalorder %s77, %s78
      %p90 = scmp.eq.s32.totalorder %s26, 13
      %p91 = por %p89, %p90
      %p93 = scmp.ne.s32.totalorder %s78, %s92
      %p94 = scmp.eq.s32.totalorder %s26, 0
      %p95 = por %p93, %p94
      %s97 = sadd.s32 %s96, 1
      %p100 = scmp.eq.s32.totalorder %s20, 13
      %p101 = scmp.ne.s32.totalorder %s96, %s98
      %p102 = scmp.eq.s32.totalorder %s20, 0
      %p103 = por %p101, %p102
      %p104 = scmp.ne.s32.totalorder %s96, %s98
      %p105 = scmp.eq.s32.totalorder %s25, 13
      %p106 = por %p104, %p105
      %p107 = scmp.ne.s32.totalorder %s98, %s99
      %p108 = scmp.eq.s32.totalorder %s25, 0
      %p109 = por %p107, %p108
      %p110 = scmp.ne.s32.totalorder %s98, %s99
      %p111 = scmp.eq.s32.totalorder %s26, 13
      %p112 = por %p110, %p111
      %p114 = scmp.ne.s32.totalorder %s99, %s113
      %p115 = scmp.eq.s32.totalorder %s26, 0
      %p116 = por %p114, %p115
      %s118 = sadd.s32 %s117, 1
      %p121 = scmp.eq.s32.totalorder %s20, 13
      %p122 = scmp.ne.s32.totalorder %s117, %s119
      %p123 = scmp.eq.s32.totalorder %s20, 0
      %p124 = por %p122, %p123
      %p125 = scmp.ne.s32.totalorder %s117, %s119
      %p126 = scmp.eq.s32.totalorder %s25, 13
      %p127 = por %p125, %p126
      %p128 = scmp.ne.s32.totalorder %s119, %s120
      %p129 = scmp.eq.s32.totalorder %s25, 0
      %p130 = por %p128, %p129
      %p131 = scmp.ne.s32.totalorder %s119, %s120
      %p132 = scmp.eq.s32.totalorder %s26, 13
      %p133 = por %p131, %p132
      %p135 = scmp.ne.s32.totalorder %s120, %s134
      %p136 = scmp.eq.s32.totalorder %s26, 0
      %p137 = por %p135, %p136
      %s139 = sadd.s32 %s138, 1
      %p142 = scmp.eq.s32.totalorder %s20, 13
      %p143 = scmp.ne.s32.totalorder %s138, %s140
      %p144 = scmp.eq.s32.totalorder %s20, 0
      %p145 = por %p143, %p144
      %p146 = scmp.ne.s32.totalorder %s138, %s140
      %p147 = scmp.eq.s32.totalorder %s25, 13
      %p148 = por %p146, %p147
      %p149 = scmp.ne.s32.totalorder %s140, %s141
      %p150 = scmp.eq.s32.totalorder %s25, 0
      %p151 = por %p149, %p150
      %p152 = scmp.ne.s32.totalorder %s140, %s141
      %p153 = scmp.eq.s32.totalorder %s26, 13
      %p154 = por %p152, %p153
      %p156 = scmp.ne.s32.totalorder %s141, %s155
      %p157 = scmp.eq.s32.totalorder %s26, 0
      %p158 = por %p156, %p157
      %s159 = ssub.s32 %s20, %s27
      %p160 = scmp.eq.s32.totalorder %s159, 0
      %s162 = sadd.s32 %s161, 1
      %s163 = scalar_select %p160, %s161, %s162
      %p166 = pneg %p160
      %p167 = scmp.eq.s32.totalorder %s20, 13
      %p168 = por %p166, %p167
      %p169 = scmp.ne.s32.totalorder %s161, %s164
      %p170 = scmp.eq.s32.totalorder %s20, 0
      %p171 = por %p169, %p170
      %p172 = scmp.ne.s32.totalorder %s161, %s164
      %p173 = scmp.eq.s32.totalorder %s25, 13
      %p174 = por %p172, %p173
      %p175 = scmp.ne.s32.totalorder %s164, %s165
      %p176 = scmp.eq.s32.totalorder %s25, 0
      %p177 = por %p175, %p176
      %p178 = scmp.ne.s32.totalorder %s164, %s165
      %p179 = scmp.eq.s32.totalorder %s26, 13
      %p180 = por %p178, %p179
      %p182 = scmp.ne.s32.totalorder %s165, %s181
      %p183 = scmp.eq.s32.totalorder %s26, 0
      %p184 = por %p182, %p183
      %p185 = scmp.le.s32.totalorder 1, %s20
      %p186 = scmp.lt.s32.totalorder %s20, 15
      %p187 = pnand %p185, %p186
      %p188 = pneg %p187
      // Predicated region
      $region9: #{tpu_custom_call.1} parent=5 // pred_check
        _
      $region10: #{tpu_custom_call.1} parent=5 // pred_check_branch
        %190 = sbr.rel (%p187) target = $region12
      $region11: #{tpu_custom_call.1} parent=5 // pred_region
        %s191 = ssub.s32 %s20, 1
        // Predicated region
        $region13: #{tpu_custom_call.1} parent=11 // pred_check
          %p192 = pneg %p67
        $region14: #{tpu_custom_call.1} parent=11 // pred_check_branch
          %194 = sbr.rel (%p192) target = $region16
        $region15: #{tpu_custom_call.1} parent=11 // pred_region
          %196 = vsyncadd [#allocation6], 0
          %s197 = sshll.u32 %s1, 4
          %s198 = int_to_ptr.hbm [resolvable:$true] %s197
          %s199 = sshll.u32 [#allocation5], 4
          %s200 = int_to_ptr.vmem [resolvable:$true] %s199
          %205 = dma.hbm_to_vmem [thread:$0]  %s198, 512, %s200, [#allocation6], 128, 128, 8
        $region16: #{tpu_custom_call.1} parent=11 // pred_fallthru
          _
        // Predicated region
        $region17: #{tpu_custom_call.1} parent=11 // pred_check
          %p206 = pneg %p88
        $region18: #{tpu_custom_call.1} parent=11 // pred_check_branch
          %208 = sbr.rel (%p206) target = $region20
        $region19: #{tpu_custom_call.1} parent=11 // pred_region
          _
        $region20: #{tpu_custom_call.1} parent=11 // pred_fallthru
          _
        // Predicated region
        $region21: #{tpu_custom_call.1} parent=11 // pred_check
          %p209 = pneg %p109
        $region22: #{tpu_custom_call.1} parent=11 // pred_check_branch
          %211 = sbr.rel (%p209) target = $region24
        $region23: #{tpu_custom_call.1} parent=11 // pred_region
          %213 = vsyncadd [#allocation6], 0
          %s214 = sshll.u32 %s3, 4
          %s215 = int_to_ptr.hbm [resolvable:$true] %s214
          %s216 = sshll.u32 [#allocation7], 4
          %s217 = int_to_ptr.vmem [resolvable:$true] %s216
          %222 = dma.hbm_to_vmem [thread:$0]  %s215, 512, %s217, [#allocation6], 128, 128, 8
        $region24: #{tpu_custom_call.1} parent=11 // pred_fallthru
          _
        // Predicated region
        $region25: #{tpu_custom_call.1} parent=11 // pred_check
          %p223 = pneg %p130
        $region26: #{tpu_custom_call.1} parent=11 // pred_check_branch
          %225 = sbr.rel (%p223) target = $region28
        $region27: #{tpu_custom_call.1} parent=11 // pred_region
          _
        $region28: #{tpu_custom_call.1} parent=11 // pred_fallthru
          _
        // Predicated region
        $region29: #{tpu_custom_call.1} parent=11 // pred_check
          %p226 = pneg %p151
        $region30: #{tpu_custom_call.1} parent=11 // pred_check_branch
          %228 = sbr.rel (%p226) target = $region32
        $region31: #{tpu_custom_call.1} parent=11 // pred_region
          %230 = vsyncadd [#allocation9], 0
          %s231 = sshll.u32 %s5, 4
          %s232 = int_to_ptr.hbm [resolvable:$true] %s231
          %s233 = sshll.u32 [#allocation8], 4
          %s234 = int_to_ptr.vmem [resolvable:$true] %s233
          %239 = dma.hbm_to_vmem [thread:$0]  %s232, 512, %s234, [#allocation9], 128, 128, 8
        $region32: #{tpu_custom_call.1} parent=11 // pred_fallthru
          _
      $region12: #{tpu_custom_call.1} parent=5 // pred_fallthru
        _
      %p240 = scmp.lt.s32.totalorder %s20, 14
      // Predicated region
      $region33: #{tpu_custom_call.1} parent=5 // pred_check
        %p241 = pneg %p240
      $region34: #{tpu_custom_call.1} parent=5 // pred_check_branch
        %243 = sbr.rel (%p241) target = $region36
      $region35: #{tpu_custom_call.1} parent=5 // pred_region
        // Predicated region
        $region37: #{tpu_custom_call.1} parent=35 // pred_check
          %p244 = pneg %p40
        $region38: #{tpu_custom_call.1} parent=35 // pred_check_branch
          %246 = sbr.rel (%p244) target = $region40
        $region39: #{tpu_custom_call.1} parent=35 // pred_region
          %s247 = sand.u32 %s30, 1
          %s248 = scalar_lea.sflag [#allocation3], %s247
          %s249 = sand.u32 %s30, 1
          %s250 = smul.addr %s249, 32
          %s251 = scalar_lea.vmem [#allocation2], %s250
          %253 = vsyncadd %s248, 0
          %s254 = smul.addr %s20, 4
          %s255 = smul.addr %s254, 8
          %s256 = scalar_lea.hbm %s0, %s255
          %s257 = sshll.u32 %s256, 4
          %s258 = int_to_ptr.hbm [resolvable:$true] %s257
          %s259 = sshll.u32 %s251, 4
          %s260 = int_to_ptr.vmem [resolvable:$true] %s259
          %265 = dma.hbm_to_vmem [thread:$0]  %s258, 512, %s260, %s248, 128, 128, 8
        $region40: #{tpu_custom_call.1} parent=35 // pred_fallthru
          _
      $region36: #{tpu_custom_call.1} parent=5 // pred_fallthru
        _
      %p266 = scmp.le.s32.totalorder 1, %s20
      %p267 = scmp.lt.s32.totalorder %s20, 15
      %p268 = pnand %p266, %p267
      %p269 = pneg %p268
      // Predicated region
      $region41: #{tpu_custom_call.1} parent=5 // pred_check
        _
      $region42: #{tpu_custom_call.1} parent=5 // pred_check_branch
        %271 = sbr.rel (%p268) target = $region44
      $region43: #{tpu_custom_call.1} parent=5 // pred_region
        %s272 = ssub.s32 %s20, 1
        %s273 = sand.u32 %s33, 1
        %s274 = scalar_lea.sflag [#allocation3], %s273
        %s275 = sand.u32 %s33, 1
        %s276 = smul.addr %s275, 32
        %s277 = scalar_lea.vmem [#allocation2], %s276
        // Predicated region
        $region45: #{tpu_custom_call.1} parent=43 // pred_check
          %p278 = pneg %p46
        $region46: #{tpu_custom_call.1} parent=43 // pred_check_branch
          %280 = sbr.rel (%p278) target = $region48
        $region47: #{tpu_custom_call.1} parent=43 // pred_region
          %282 = dma.done %s274, 512
        $region48: #{tpu_custom_call.1} parent=43 // pred_fallthru
          _
        // Predicated region
        $region49: #{tpu_custom_call.1} parent=43 // pred_check
          %p283 = pneg %p67
        $region50: #{tpu_custom_call.1} parent=43 // pred_check_branch
          %285 = sbr.rel (%p283) target = $region52
        $region51: #{tpu_custom_call.1} parent=43 // pred_region
          %287 = dma.done [#allocation6], 512
        $region52: #{tpu_custom_call.1} parent=43 // pred_fallthru
          _
        // Predicated region
        $region53: #{tpu_custom_call.1} parent=43 // pred_check
          %p288 = pneg %p109
        $region54: #{tpu_custom_call.1} parent=43 // pred_check_branch
          %290 = sbr.rel (%p288) target = $region56
        $region55: #{tpu_custom_call.1} parent=43 // pred_region
          %292 = dma.done [#allocation6], 512
        $region56: #{tpu_custom_call.1} parent=43 // pred_fallthru
          _
        // Predicated region
        $region57: #{tpu_custom_call.1} parent=43 // pred_check
          %p293 = pneg %p151
        $region58: #{tpu_custom_call.1} parent=43 // pred_check_branch
          %295 = sbr.rel (%p293) target = $region60
        $region59: #{tpu_custom_call.1} parent=43 // pred_region
          %297 = dma.done [#allocation9], 512
        $region60: #{tpu_custom_call.1} parent=43 // pred_fallthru
          _
        %s298 = sand.u32 %s33, 1
        %s299 = scalar_lea.sflag [#allocation3], %s298
        %s300 = sand.u32 %s33, 1
        %s301 = smul.addr %s300, 32
        %s302 = scalar_lea.vmem [#allocation2], %s301
        %p303 = pneg %p46
        %p304 = pneg %p43
        %p305 = pneg %p67
        %p306 = pneg %p64
        %p307 = pneg %p88
        %p308 = pneg %p85
        %p309 = pneg %p109
        %p310 = pneg %p106
        %p311 = pneg %p130
        %p312 = pneg %p127
        %p313 = pneg %p151
        %p314 = pneg %p148
        %p315 = pneg %p177
        %p316 = pneg %p174
        %s317 = sand.u32 %s164, 1
        %s318 = scalar_lea.sflag [#allocation4], %s317
        %s319 = sand.u32 %s164, 1
        %s320 = smul.addr %s319, 8
        %s321 = scalar_lea.vmem [#allocation10], %s320
        %v322 = vld [vmem:[%s277] sm:$0xff]
        %v323 = vld [vmem:[%s277 + $0x8] sm:$0xff]
        %v324 = vld [vmem:[%s277 + $0x10] sm:$0xff]
        %v325 = vld [vmem:[%s277 + $0x18] sm:$0xff]
        %v326 = vld [vmem:[#allocation5] sm:$0xff]
        %v327 = vld [vmem:[#allocation5 + $0x8] sm:$0xff]
        %v328 = vld [vmem:[#allocation5 + $0x10] sm:$0xff]
        %v329 = vld [vmem:[#allocation5 + $0x18] sm:$0xff]
        %v330 = vld [vmem:[%s2] sm:$0x1]
        %v331 = vld [vmem:[#allocation7] sm:$0xff]
        %v332 = vld [vmem:[#allocation7 + $0x8] sm:$0xff]
        %v333 = vld [vmem:[#allocation7 + $0x10] sm:$0xff]
        %v334 = vld [vmem:[#allocation7 + $0x18] sm:$0xff]
        %v335 = vld [vmem:[%s4] sm:$0x1]
        %v336 = vld [vmem:[#allocation8] sm:$0xff]
        %v337 = vld [vmem:[#allocation8 + $0x8] sm:$0xff]
        %v338 = vld [vmem:[#allocation8 + $0x10] sm:$0xff]
        %v339 = vld [vmem:[#allocation8 + $0x18] sm:$0xff]
        %v341 = vperm.slane %v330, 0
        %vm343 = vcmask 261120
        %v345 = vsel %vm343, %v322, 0
        %v348 = vsel %vm343, %v323, 0
        %v351 = vsel %vm343, %v324, 0
        %v354 = vsel %vm343, %v325, 0
        %356 = vmatpush.msra.mxu0 0.0
        %357 = vmatpush.msra.mxu0 0.0
        %358 = vmatpush.msra.mxu0 0.0
        %359 = vmatpush.msra.mxu0 0.0
        %360 = vmatpush.msra.mxu0 0.0
        %361 = vmatpush.msra.mxu0 0.0
        %362 = vmatpush.msra.mxu0 0.0
        %363 = vmatpush.msra.mxu0 0.0
        %364 = vmatpush.msra.mxu0 0.0
        %365 = vmatpush.msra.mxu0 0.0
        %366 = vmatpush.msra.mxu0 0.0
        %367 = vmatpush.msra.mxu0 0.0
        %368 = vmatpush.msra.mxu0 %v329
        %369 = vmatpush.msra.mxu0 %v328
        %370 = vmatpush.msra.mxu0 %v327
        %371 = vmatpush.msra.mxu0 %v326
        %372 = vmatmul.f32.gmra.mxu0 %v345
        %v373 = vpop.f32.mrf.mxu0
        %v374 = vadd.f32 %v341, %v373
        %375 = vmatmul.f32.gmra.mxu0 %v348
        %v376 = vpop.f32.mrf.mxu0
        %v377 = vadd.f32 %v341, %v376
        %378 = vmatmul.f32.gmra.mxu0 %v351
        %v379 = vpop.f32.mrf.mxu0
        %v380 = vadd.f32 %v341, %v379
        %381 = vmatmul.f32.gmra.mxu0 %v354
        %v382 = vpop.f32.mrf.mxu0
        %v383 = vadd.f32 %v341, %v382
        %384 = vdwg.mxu0
        %v386 = vsel %vm343, %v374, 0
        %v389 = vsel %vm343, %v377, 0
        %v392 = vsel %vm343, %v380, 0
        %v395 = vsel %vm343, %v383, 0
        %397 = vmatpush.xpose.msra.mxu0 0.0
        %398 = vmatpush.xpose.msra.mxu0 0.0
        %399 = vmatpush.xpose.msra.mxu0 0.0
        %400 = vmatpush.xpose.msra.mxu0 0.0
        %401 = vmatpush.xpose.msra.mxu0 0.0
        %402 = vmatpush.xpose.msra.mxu0 0.0
        %403 = vmatpush.xpose.msra.mxu0 0.0
        %404 = vmatpush.xpose.msra.mxu0 0.0
        %405 = vmatpush.xpose.msra.mxu0 0.0
        %406 = vmatpush.xpose.msra.mxu0 0.0
        %407 = vmatpush.xpose.msra.mxu0 0.0
        %408 = vmatpush.xpose.msra.mxu0 0.0
        %409 = vmatpush.xpose.msra.mxu0 %v395
        %410 = vmatpush.xpose.msra.mxu0 %v392
        %411 = vmatpush.xpose.msra.mxu0 %v389
        %412 = vmatpush.xpose.msra.mxu0 %v386
        %413 = vmatmul.f32.gmra.mxu0 %v386
        %v414 = vpop.f32.mrf.mxu0
        %v415 = vadd.f32 0.0, %v414
        %416 = vmatmul.f32.gmra.mxu0 %v389
        %v417 = vpop.f32.mrf.mxu0
        %v418 = vadd.f32 0.0, %v417
        %419 = vmatmul.f32.gmra.mxu0 %v392
        %v420 = vpop.f32.mrf.mxu0
        %v421 = vadd.f32 0.0, %v420
        %422 = vmatmul.f32.gmra.mxu0 %v395
        %v423 = vpop.f32.mrf.mxu0
        %v424 = vadd.f32 0.0, %v423
        %425 = vdwg.mxu0
        %v426 = vlaneseq
        %v427 = vshrl.u32 %v426, 7
        %v428 = vadd.s32 %v427, 8
        %v429 = vadd.s32 %v427, 16
        %v430 = vadd.s32 %v427, 24
        %v431 = vlaneseq
        %v432 = vand.u32 %v431, 127
        %vm433 = vcmp.eq.s32.totalorder %v427, %v432
        %vm434 = vcmp.eq.s32.totalorder %v428, %v432
        %vm435 = vcmp.eq.s32.totalorder %v429, %v432
        %vm436 = vcmp.eq.s32.totalorder %v430, %v432
        %v437 = vsel %vm433, 1, 0
        %v438 = vsel %vm434, 1, 0
        %v439 = vsel %vm435, 1, 0
        %v440 = vsel %vm436, 1, 0
        %v441 = vcvt.s32.f32 %v437
        %v442 = vcvt.s32.f32 %v438
        %v443 = vcvt.s32.f32 %v439
        %v444 = vcvt.s32.f32 %v440
        %v445 = vmul.f32 %v441, 1e+08
        %v446 = vmul.f32 %v442, 1e+08
        %v447 = vmul.f32 %v443, 1e+08
        %v448 = vmul.f32 %v444, 1e+08
        %v449 = vsub.f32 %v415, %v445
        %v450 = vsub.f32 %v418, %v446
        %v451 = vsub.f32 %v421, %v447
        %v452 = vsub.f32 %v424, %v448
        %vm453 = vcmp.ge.f32.partialorder %v449, 0.0
        %vm454 = vcmp.ge.f32.partialorder %v450, 0.0
        %vm455 = vcmp.ge.f32.partialorder %v451, 0.0
        %vm456 = vcmp.ge.f32.partialorder %v452, 0.0
        %v457 = vmul.f32 %v449, 0.01
        %v458 = vmul.f32 %v450, 0.01
        %v459 = vmul.f32 %v451, 0.01
        %v460 = vmul.f32 %v452, 0.01
        %v461 = vsel %vm453, %v449, %v457
        %v462 = vsel %vm454, %v450, %v458
        %v463 = vsel %vm455, %v451, %v459
        %v464 = vsel %vm456, %v452, %v460
        %v465 = vsel %vm343, %v461, -inf
        %466 = vmax.xlane.f32.xlu0 %v465
        %v467 = vpop.xlane.xlu0 %466
        %v468 = vsel %vm343, %v462, -inf
        %469 = vmax.xlane.f32.xlu0 %v468
        %v470 = vpop.xlane.xlu0 %469
        %v471 = vsel %vm343, %v463, -inf
        %472 = vmax.xlane.f32.xlu0 %v471
        %v473 = vpop.xlane.xlu0 %472
        %v474 = vsel %vm343, %v464, -inf
        %475 = vmax.xlane.f32.xlu0 %v474
        %v476 = vpop.xlane.xlu0 %475
        %v477 = vsub.f32 %v461, %v467
        %v478 = vsub.f32 %v462, %v470
        %v479 = vsub.f32 %v463, %v473
        %v480 = vsub.f32 %v464, %v476
        %v481 = vmul.f32 %v477, 1.442695
        %v482 = vpow.pop %v481
        %v483 = vmul.f32 %v478, 1.442695
        %v484 = vpow.pop %v483
        %v485 = vmul.f32 %v479, 1.442695
        %v486 = vpow.pop %v485
        %v487 = vmul.f32 %v480, 1.442695
        %v488 = vpow.pop %v487
        %v489 = vsel %vm343, %v482, 0.0
        %490 = vadd.xlane.f32.xlu0 %v489
        %v491 = vpop.xlane.xlu0 %490
        %v492 = vsel %vm343, %v484, 0.0
        %493 = vadd.xlane.f32.xlu0 %v492
        %v494 = vpop.xlane.xlu0 %493
        %v495 = vsel %vm343, %v486, 0.0
        %496 = vadd.xlane.f32.xlu0 %v495
        %v497 = vpop.xlane.xlu0 %496
        %v498 = vsel %vm343, %v488, 0.0
        %499 = vadd.xlane.f32.xlu0 %v498
        %v500 = vpop.xlane.xlu0 %499
        %v501 = vrcp.pop %v491
        %v502 = vmul.f32 %v491, %v501
        %v503 = vsub.f32 1.0, %v502
        %v504 = vmul.f32 %v501, %v503
        %v505 = vadd.f32 %v501, %v504
        %vm506 = vweird.f32 %v491
        %vm507 = vweird.f32 %v501
        %vm508 = vmor %vm506, %vm507
        %v509 = vsel %vm508, %v501, %v505
        %v510 = vand.u32 2147483647, %v491
        %vm511 = vcmp.eq.f32.partialorder %v510, 8.507059e+37
        %v512 = vand.u32 %v491, 2147483648
        %v513 = vor.u32 1.1754944e-38, %v512
        %v514 = vsel %vm511, %v513, %v509
        %v515 = vmul.f32 %v482, %v514
        %v516 = vrcp.pop %v494
        %v517 = vmul.f32 %v494, %v516
        %v518 = vsub.f32 1.0, %v517
        %v519 = vmul.f32 %v516, %v518
        %v520 = vadd.f32 %v516, %v519
        %vm521 = vweird.f32 %v494
        %vm522 = vweird.f32 %v516
        %vm523 = vmor %vm521, %vm522
        %v524 = vsel %vm523, %v516, %v520
        %v525 = vand.u32 2147483647, %v494
        %vm526 = vcmp.eq.f32.partialorder %v525, 8.507059e+37
        %v527 = vand.u32 %v494, 2147483648
        %v528 = vor.u32 1.1754944e-38, %v527
        %v529 = vsel %vm526, %v528, %v524
        %v530 = vmul.f32 %v484, %v529
        %v531 = vrcp.pop %v497
        %v532 = vmul.f32 %v497, %v531
        %v533 = vsub.f32 1.0, %v532
        %v534 = vmul.f32 %v531, %v533
        %v535 = vadd.f32 %v531, %v534
        %vm536 = vweird.f32 %v497
        %vm537 = vweird.f32 %v531
        %vm538 = vmor %vm536, %vm537
        %v539 = vsel %vm538, %v531, %v535
        %v540 = vand.u32 2147483647, %v497
        %vm541 = vcmp.eq.f32.partialorder %v540, 8.507059e+37
        %v542 = vand.u32 %v497, 2147483648
        %v543 = vor.u32 1.1754944e-38, %v542
        %v544 = vsel %vm541, %v543, %v539
        %v545 = vmul.f32 %v486, %v544
        %v546 = vrcp.pop %v500
        %v547 = vmul.f32 %v500, %v546
        %v548 = vsub.f32 1.0, %v547
        %v549 = vmul.f32 %v546, %v548
        %v550 = vadd.f32 %v546, %v549
        %vm551 = vweird.f32 %v500
        %vm552 = vweird.f32 %v546
        %vm553 = vmor %vm551, %vm552
        %v554 = vsel %vm553, %v546, %v550
        %v555 = vand.u32 2147483647, %v500
        %vm556 = vcmp.eq.f32.partialorder %v555, 8.507059e+37
        %v557 = vand.u32 %v500, 2147483648
        %v558 = vor.u32 1.1754944e-38, %v557
        %v559 = vsel %vm556, %v558, %v554
        %v560 = vmul.f32 %v488, %v559
        %v561 = vadd.f32 %v515, %v441
        %v562 = vadd.f32 %v530, %v442
        %v563 = vadd.f32 %v545, %v443
        %v564 = vadd.f32 %v560, %v444
        %v565 = vmul.f32 %v561, %v336
        %v566 = vmul.f32 %v562, %v337
        %v567 = vmul.f32 %v563, %v338
        %v568 = vmul.f32 %v564, %v339
        %v570 = vsel %vm343, %v565, 0
        %v573 = vsel %vm343, %v566, 0
        %v576 = vsel %vm343, %v567, 0
        %v579 = vsel %vm343, %v568, 0
        %581 = vmatpush.msra.mxu0 0.0
        %582 = vmatpush.msra.mxu0 0.0
        %583 = vmatpush.msra.mxu0 0.0
        %584 = vmatpush.msra.mxu0 0.0
        %585 = vmatpush.msra.mxu0 0.0
        %586 = vmatpush.msra.mxu0 0.0
        %587 = vmatpush.msra.mxu0 0.0
        %588 = vmatpush.msra.mxu0 0.0
        %589 = vmatpush.msra.mxu0 0.0
        %590 = vmatpush.msra.mxu0 0.0
        %591 = vmatpush.msra.mxu0 0.0
        %592 = vmatpush.msra.mxu0 0.0
        %593 = vmatpush.msra.mxu0 %v325
        %594 = vmatpush.msra.mxu0 %v324
        %595 = vmatpush.msra.mxu0 %v323
        %596 = vmatpush.msra.mxu0 %v322
        %597 = vmatmul.f32.gmra.mxu0 %v570
        %v598 = vpop.f32.mrf.mxu0
        %v599 = vadd.f32 0.0, %v598
        %600 = vmatmul.f32.gmra.mxu0 %v573
        %v601 = vpop.f32.mrf.mxu0
        %v602 = vadd.f32 0.0, %v601
        %603 = vmatmul.f32.gmra.mxu0 %v576
        %v604 = vpop.f32.mrf.mxu0
        %v605 = vadd.f32 0.0, %v604
        %606 = vmatmul.f32.gmra.mxu0 %v579
        %v607 = vpop.f32.mrf.mxu0
        %v608 = vadd.f32 0.0, %v607
        %609 = vdwg.mxu0
        %v611 = vperm.slane %v335, 0
        %v614 = vsel %vm343, %v599, 0
        %v617 = vsel %vm343, %v602, 0
        %v620 = vsel %vm343, %v605, 0
        %v623 = vsel %vm343, %v608, 0
        %625 = vmatpush.msra.mxu0 0.0
        %626 = vmatpush.msra.mxu0 0.0
        %627 = vmatpush.msra.mxu0 0.0
        %628 = vmatpush.msra.mxu0 0.0
        %629 = vmatpush.msra.mxu0 0.0
        %630 = vmatpush.msra.mxu0 0.0
        %631 = vmatpush.msra.mxu0 0.0
        %632 = vmatpush.msra.mxu0 0.0
        %633 = vmatpush.msra.mxu0 0.0
        %634 = vmatpush.msra.mxu0 0.0
        %635 = vmatpush.msra.mxu0 0.0
        %636 = vmatpush.msra.mxu0 0.0
        %637 = vmatpush.msra.mxu0 %v334
        %638 = vmatpush.msra.mxu0 %v333
        %639 = vmatpush.msra.mxu0 %v332
        %640 = vmatpush.msra.mxu0 %v331
        %641 = vmatmul.f32.gmra.mxu0 %v614
        %v642 = vpop.f32.mrf.mxu0
        %v643 = vadd.f32 %v611, %v642
        %644 = vmatmul.f32.gmra.mxu0 %v617
        %v645 = vpop.f32.mrf.mxu0
        %v646 = vadd.f32 %v611, %v645
        %647 = vmatmul.f32.gmra.mxu0 %v620
        %v648 = vpop.f32.mrf.mxu0
        %v649 = vadd.f32 %v611, %v648
        %650 = vmatmul.f32.gmra.mxu0 %v623
        %v651 = vpop.f32.mrf.mxu0
        %v652 = vadd.f32 %v611, %v651
        %653 = vdwg.mxu0
        %v654 = vadd.f32 %v643, %v322
        %v655 = vadd.f32 %v646, %v323
        %v656 = vadd.f32 %v649, %v324
        %v657 = vadd.f32 %v652, %v325
        %vm658 = vcmp.ge.f32.partialorder %v654, 0.0
        %vm659 = vcmp.ge.f32.partialorder %v655, 0.0
        %vm660 = vcmp.ge.f32.partialorder %v656, 0.0
        %vm661 = vcmp.ge.f32.partialorder %v657, 0.0
        %v662 = vmul.f32 %v654, 0.01
        %v663 = vmul.f32 %v655, 0.01
        %v664 = vmul.f32 %v656, 0.01
        %v665 = vmul.f32 %v657, 0.01
        %v666 = vsel %vm658, %v654, %v662
        %v667 = vsel %vm659, %v655, %v663
        %v668 = vsel %vm660, %v656, %v664
        %v669 = vsel %vm661, %v657, %v665
        %v670 = vadd.f32 %v666, %v667
        %v671 = vadd.f32 %v670, %v668
        %v672 = vadd.f32 %v671, %v669
        %v673 = vmul.f32 %v672, 0.25
        %674 = vst.msk [vmem:[%s321] sm:$0xff] %vm343, %v673
        %s675 = sand.u32 %s164, 1
        %s676 = scalar_lea.sflag [#allocation4], %s675
        %s677 = sand.u32 %s164, 1
        %s678 = smul.addr %s677, 8
        %s679 = scalar_lea.vmem [#allocation10], %s678
        // Predicated region
        $region61: #{tpu_custom_call.1} parent=43 // pred_check
          %p680 = pneg %p174
        $region62: #{tpu_custom_call.1} parent=43 // pred_check_branch
          %682 = sbr.rel (%p680) target = $region64
        $region63: #{tpu_custom_call.1} parent=43 // pred_region
          %684 = vsyncadd %s676, 0
          %s685 = smul.addr %s25, 8
          %s686 = scalar_lea.hbm %s6, %s685
          %s688 = sshll.u32 %s679, 4
          %s689 = int_to_ptr.vmem [resolvable:$true] %s688
          %s690 = sshll.u32 %s686, 4
          %s691 = int_to_ptr.hbm [resolvable:$true] %s690
          %693 = dma.vmem_to_hbm [thread:$0]  %s689, 128, %s691, %s676
        $region64: #{tpu_custom_call.1} parent=43 // pred_fallthru
          _
      $region44: #{tpu_custom_call.1} parent=5 // pred_fallthru
        _
      %p694 = scmp.le.s32.totalorder 2, %s20
      // Predicated region
      $region65: #{tpu_custom_call.1} parent=5 // pred_check
        %p695 = pneg %p694
      $region66: #{tpu_custom_call.1} parent=5 // pred_check_branch
        %697 = sbr.rel (%p695) target = $region68
      $region67: #{tpu_custom_call.1} parent=5 // pred_region
        %s698 = ssub.s32 %s20, 2
        // Predicated region
        $region69: #{tpu_custom_call.1} parent=67 // pred_check
          %p699 = pneg %p180
        $region70: #{tpu_custom_call.1} parent=67 // pred_check_branch
          %701 = sbr.rel (%p699) target = $region72
        $region71: #{tpu_custom_call.1} parent=67 // pred_region
          %s702 = sand.u32 %s165, 1
          %s703 = scalar_lea.sflag [#allocation4], %s702
          %s704 = sand.u32 %s165, 1
          %s705 = smul.addr %s704, 8
          %s706 = scalar_lea.vmem [#allocation10], %s705
          %708 = dma.done %s703, 128
        $region72: #{tpu_custom_call.1} parent=67 // pred_fallthru
          _
      $region68: #{tpu_custom_call.1} parent=5 // pred_fallthru
        _
    $region6: #{tpu_custom_call.1} parent=1 // loop_footer
      %s24 = sadd.s32 1, %s20
    $region7: #{tpu_custom_call.1} parent=1 // loop_footer_branch
      %19 = sbr.rel target = $region3
    $region8: #{tpu_custom_call.1} parent=1 // loop_exit
      _
    %709 = vsyncpa [#allocation3], 1
    %s710 = scalar_lea.sflag [#allocation3], 1
    %711 = vsyncpa %s710, 1
    %712 = vsyncpa [#allocation6], 1
    %713 = vsyncpa [#allocation9], 1
    %714 = vsyncpa [#allocation4], 1
    %s715 = scalar_lea.sflag [#allocation4], 1
    %716 = vsyncpa %s715, 1

</llo_original>
